<compile_context>
chip_gen: v5e
topology: v5e:2x2
jax: 0.10.0
libtpu: 0.0.40
codegen_flags: <defaults>
</compile_context>

<pallas_src>
import functools

import jax
import jax.numpy as jnp
import numpy as np
from jax import lax
from jax.experimental import pallas as pl
from jax.experimental.pallas import tpu as pltpu


def _fused_decoder_block_kernel(x_ref, w1_ref, b1_ref, wt_ref, bt_ref, o_ref,
                                *, W, TH):
    """One (batch, h-tile) grid step: ConvRelu(3x3) -> polyphase deconv -> ReLU.

    Layout: channels on sublanes, flattened spatial (row*W + col) on lanes.
      x_ref : (Cin_p,  (TH+3)*W)   input rows [t*TH-1, t*TH+TH+2), zero outside image
      w1_ref: (Cmid_p, 9*Cin_p)    3x3 conv weights, column = (kh*3+kw)*Cin_p + ci
      b1_ref: (Cmid_p, 1)          f32
      wt_ref: (4*Cout, 4*Cmid_p)   polyphase deconv matrix, row = phase*Cout + oc,
                                   column = tap*Cmid_p + ic, taps {y00,y01,y10,y11}
      bt_ref: (4*Cout, 1)          f32 (bias tiled over the 4 output parities)
      o_ref : (4*Cout, TH*W)       phase-major output, phase = 2*(oh%2) + (ow%2)
    """
    _, rw = x_ref.shape
    yw = (TH + 1) * W          # stage-1 width: TH rows + 1 halo row (deconv m+1 taps)
    tw = TH * W                # per-phase output width (lane aligned when T > 1)

    x = x_ref[...]

    # Single lane iota at the widest width; every mask below is a slice of it.
    lane = lax.broadcasted_iota(jnp.int32, (1, rw), 1)
    col = lane % W

    # ------------- stage 1: Conv2d(3x3, pad=1) + bias + ReLU (ONE MXU dot) -------------
    # Pre-mask the SOURCE once per horizontal direction instead of per tap:
    #   kw=0 taps read col-1 -> source col W-1 is never legitimately used, zero it;
    #   kw=2 taps read col+1 -> source col 0   is never legitimately used, zero it.
    # NOTE: rw == yw + 2*W, so only the very last used lane of the kh=2,kw=2 tap
    # wraps around circularly; the wrapped read hits (row 0, col 0), which is zeroed
    # by the kw=2 source mask -- do not shrink the 3-row bottom halo.
    x_l = jnp.where(col == W - 1, jnp.zeros_like(x), x)   # source for kw=0 taps
    x_r = jnp.where(col == 0, jnp.zeros_like(x), x)       # source for kw=2 taps

    taps = []
    for kh in range(3):
        for kw in range(3):
            src = x_l if kw == 0 else (x if kw == 1 else x_r)
            off = kh * W + (kw - 1)                        # flat offset of the tap source
            taps.append(src if off == 0 else pltpu.roll(src, shift=(-off) % rw, axis=1))
    x9 = jnp.concatenate(taps, axis=0)[:, :yw]             # (9*Cin_p, yw)

    acc1 = jnp.dot(w1_ref[...], x9, preferred_element_type=jnp.float32)   # (Cmid_p, yw)
    y = jnp.maximum(acc1 + b1_ref[...], 0.0)               # f32; never leaves VMEM/vregs

    # Zero the halo y-row when it falls outside the image (last h-tile only).
    last_tile = pl.program_id(1) == pl.num_programs(1) - 1
    keep = jnp.logical_or(lane[:, :yw] < tw, jnp.logical_not(last_tile))
    y = jnp.where(keep, y, 0.0)

    # ---- stage 2: ConvTranspose2d(3, s=2, p=1, op=1) + bias + ReLU (ONE MXU dot) ----
    # Polyphase: out[2m+ph, 2n+pw] only needs y[m,n], y[m,n+1], y[m+1,n], y[m+1,n+1],
    # so the 75%-zero dilated intermediate is never materialized.
    # The n+1 taps never legitimately read source col 0 -> zero it once; this also
    # covers the single circular wrap of the y11 roll (same rw/yw coupling as above).
    y_m = jnp.where(col[:, :yw] == 0, jnp.zeros_like(y), y)
    y01 = pltpu.roll(y_m, shift=yw - 1, axis=1)            # y[m,   n+1]
    y10 = pltpu.roll(y,   shift=yw - W, axis=1)            # y[m+1, n  ]
    y11 = pltpu.roll(y_m, shift=yw - W - 1, axis=1)        # y[m+1, n+1]
    y4 = jnp.concatenate([y, y01, y10, y11], axis=0)[:, :tw]   # (4*Cmid_p, tw) f32

    acc2 = jnp.dot(wt_ref[...], y4, preferred_element_type=jnp.float32)   # (4*Cout, tw)
    o_ref[...] = jnp.maximum(acc2 + bt_ref[...], 0.0).astype(o_ref.dtype)


def _round_up(v, m):
    return (v + m - 1) // m * m


def _vmem_capacity_bytes():
    """Physical VMEM of the current generation (64 MiB v7x, 128 MiB v5e/v6e)."""
    try:
        info = pltpu.get_tpu_info()
        for attr in ("vmem_capacity_bytes", "vmem_bytes", "vmem_size_bytes"):
            v = getattr(info, attr, None)
            if v:
                return int(v)
    except Exception:
        pass
    return 64 * 1024 * 1024      # conservative (v7x-sized) default


def _pick_tile_h(H, W, N, cin_p, cmid_p, cout, in_isz, out_isz, budget_bytes):
    """Largest H-tile (lane-aligned output blocks when tiled) whose per-step
    working set fits the VMEM budget; prefers >=2 parallel grid steps (v7x)."""
    cands = [th for th in range(1, H + 1)
             if H % th == 0 and (th == H or (th * W) % 128 == 0)]

    def step_bytes(th):
        rw, yw, tw = (th + 3) * W, (th + 1) * W, th * W
        b = 2 * cin_p * rw * in_isz                 # double-buffered input tile
        b += 2 * 4 * cout * tw * out_isz            # double-buffered output tile
        b += 9 * cin_p * yw * in_isz                # stacked conv-tap operand
        b += 2 * cmid_p * yw * 4                    # y (f32) + masked copy
        b += 4 * cmid_p * tw * 4                    # stacked deconv operand (f32)
        b += 2 * 4 * cout * tw * 4                  # f32 accumulator headroom
        return b

    fitting = [th for th in cands if step_bytes(th) <= budget_bytes]
    if not fitting:
        return min(cands, key=step_bytes)           # smallest footprint available
    th = max(fitting)
    if N * (H // th) < 2:                           # keep both v7x TensorCores busy
        multi = [t for t in fitting if H // t >= 2]
        if multi:
            th = max(multi)
    return th


def decoder_block_forward(x_nchw, params, *, compute_dtype=jnp.bfloat16,
                          out_dtype=None, tile_h=None):
    """Exact DecoderBlock.forward semantics (NCHW in, NCHW out), fused Pallas kernel."""
    w1, b1, wt, bt = params["w1"], params["b1"], params["wt"], params["bt"]
    N, Cin, H, W = x_nchw.shape
    Cmid = w1.shape[0]
    Cout = wt.shape[1]
    out_dtype = compute_dtype if out_dtype is None else out_dtype

    in_isz = jnp.dtype(compute_dtype).itemsize
    out_isz = jnp.dtype(out_dtype).itemsize
    # Pad channel counts to the sublane-packing granularity so the in-kernel
    # sublane concatenations are tile-aligned (pad channels get zero weights).
    CIN_P = _round_up(Cin, 16 if in_isz == 2 else 8)
    CMID_P = _round_up(Cmid, 8)                       # stage-2 operand is always f32

    vmem_limit = min((_vmem_capacity_bytes() * 3) // 4, 112 * 1024 * 1024)
    TH = (_pick_tile_h(H, W, N, CIN_P, CMID_P, Cout, in_isz, out_isz, vmem_limit // 2)
          if tile_h is None else tile_h)
    if H % TH:
        raise ValueError(f"tile_h={TH} must divide H={H}")
    T = H // TH
    if T > 1 and (TH * W) % 128:
        raise ValueError("tile_h*W must be a multiple of 128 when using more than one h-tile")
    RW = (TH + 3) * W
    YW = (TH + 1) * W
    TW = TH * W
    # The kernel relies on RW == YW + 2*W so that exactly one tap lane wraps (and
    # that wrapped read is zeroed by the source-column mask).
    assert RW == YW + 2 * W

    # ---- wrapper-side layout plumbing (pure XLA, cheap) ----
    # Pad H by (1 top, 2 bottom) so every h-tile carries its 3-row halo, pad the
    # channel axis to CIN_P, flatten spatial onto the lane dimension.
    xpad = jnp.pad(x_nchw, ((0, 0), (0, CIN_P - Cin), (1, 2), (0, 0))).astype(compute_dtype)
    if T == 1:
        x_t = xpad.reshape(N, 1, CIN_P, RW)
    else:
        # TODO(synk): for small TH replace this overlapping stack with in-kernel
        # manual DMA (memory_space=pl.ANY + make_async_copy) to avoid the extra
        # XLA pass and the (TH+3)/TH duplicated HBM reads.
        x_t = jnp.stack([xpad[:, :, t * TH:t * TH + TH + 3, :] for t in range(T)],
                        axis=1).reshape(N, T, CIN_P, RW)

    # Conv2d weights (OIHW) -> (Cmid_p, 9*Cin_p), column = (kh*3+kw)*Cin_p + ci.
    w1_p = jnp.zeros((CMID_P, CIN_P, 3, 3), w1.dtype).at[:Cmid, :Cin].set(w1)
    w1_flat = jnp.transpose(w1_p, (0, 2, 3, 1)).reshape(CMID_P, 9 * CIN_P).astype(compute_dtype)
    b1_col = jnp.pad(b1, (0, CMID_P - Cmid)).reshape(CMID_P, 1).astype(jnp.float32)

    # ConvTranspose2d weights (IOHW) -> ONE (4*Cout, 4*Cmid_p) polyphase matrix.
    # Row = phase*Cout + oc with phase = 2*(oh%2) + (ow%2); column = tap*Cmid_p + ic
    # with taps ordered (y[m,n], y[m,n+1], y[m+1,n], y[m+1,n+1]).
    wt_oc = jnp.transpose(wt, (1, 0, 2, 3))                       # (Cout, Cmid, kh, kw)
    wt_oc = jnp.pad(wt_oc, ((0, 0), (0, CMID_P - Cmid), (0, 0), (0, 0)))
    z = jnp.zeros((Cout, CMID_P), wt.dtype)
    w_y00 = jnp.concatenate([wt_oc[:, :, 1, 1], wt_oc[:, :, 1, 2],
                             wt_oc[:, :, 2, 1], wt_oc[:, :, 2, 2]], axis=0)
    w_y01 = jnp.concatenate([z, wt_oc[:, :, 1, 0], z, wt_oc[:, :, 2, 0]], axis=0)
    w_y10 = jnp.concatenate([z, z, wt_oc[:, :, 0, 1], wt_oc[:, :, 0, 2]], axis=0)
    w_y11 = jnp.concatenate([z, z, z, wt_oc[:, :, 0, 0]], axis=0)
    wt_big = jnp.concatenate([w_y00, w_y01, w_y10, w_y11], axis=1).astype(jnp.float32)
    bt4 = jnp.tile(bt, 4).reshape(4 * Cout, 1).astype(jnp.float32)

    kernel = functools.partial(_fused_decoder_block_kernel, W=W, TH=TH)
    out_flat = pl.pallas_call(
        kernel,
        grid=(N, T),
        in_specs=[
            pl.BlockSpec((None, None, CIN_P, RW), lambda n, t: (n, t, 0, 0)),
            pl.BlockSpec((CMID_P, 9 * CIN_P), lambda n, t: (0, 0)),
            pl.BlockSpec((CMID_P, 1), lambda n, t: (0, 0)),
            pl.BlockSpec((4 * Cout, 4 * CMID_P), lambda n, t: (0, 0)),
            pl.BlockSpec((4 * Cout, 1), lambda n, t: (0, 0)),
        ],
        out_specs=pl.BlockSpec((None, 4 * Cout, TW), lambda n, t: (n, 0, t)),
        out_shape=jax.ShapeDtypeStruct((N, 4 * Cout, H * W), out_dtype),
        compiler_params=pltpu.CompilerParams(
            dimension_semantics=("parallel", "parallel"),
            vmem_limit_bytes=vmem_limit,
        ),
    )(x_t, w1_flat, b1_col, wt_big, bt4)

    # TODO(synk): for very small N*T, pack several images/h-tiles into one grid
    # step along the lane axis to amortize the ~600-cycle per-step overhead.

    # Phase-major (4*Cout, H*W) -> NCHW (N, Cout, 2H, 2W) depth-to-space.
    out = out_flat.reshape(N, 2, 2, Cout, H, W)
    out = jnp.transpose(out, (0, 3, 4, 1, 5, 2)).reshape(N, Cout, 2 * H, 2 * W)
    return out


def _reference(x_nchw, params):
    """Pure-JAX reference (lax convs) with PyTorch semantics."""
    w1, b1, wt, bt = params["w1"], params["b1"], params["wt"], params["bt"]
    dn = ("NCHW", "OIHW", "NCHW")
    hi = jax.lax.Precision.HIGHEST
    y = jax.lax.conv_general_dilated(
        x_nchw, w1, (1, 1), ((1, 1), (1, 1)), dimension_numbers=dn, precision=hi)
    y = jnp.maximum(y + b1[None, :, None, None], 0.0)
    wt_conv = jnp.transpose(jnp.flip(wt, axis=(2, 3)), (1, 0, 2, 3))  # (Cout,Cmid,3,3)
    z = jax.lax.conv_general_dilated(
        y, wt_conv, (1, 1), ((1, 2), (1, 2)), lhs_dilation=(2, 2),
        dimension_numbers=dn, precision=hi)
    z = jnp.maximum(z + bt[None, :, None, None], 0.0)
    return z


if __name__ == "__main__":
    key = jax.random.PRNGKey(0)
    k1, k2, k3, k4, k5 = jax.random.split(key, 5)

    N, Cin, H, W = 2, 4, 16, 16
    Cmid, Cout = 8, 4

    x = jax.random.normal(k1, (N, Cin, H, W), jnp.float32)
    w1 = 0.1 * jax.random.normal(k2, (Cmid, Cin, 3, 3), jnp.float32)   # Conv2d weight (OIHW)
    b1 = 0.1 * jax.random.normal(k3, (Cmid,), jnp.float32)
    wt = 0.1 * jax.random.normal(k4, (Cmid, Cout, 3, 3), jnp.float32)  # ConvTranspose2d weight (IOHW)
    bt = 0.1 * jax.random.normal(k5, (Cout,), jnp.float32)
    params = {"w1": w1, "b1": b1, "wt": wt, "bt": bt}

    ref = jax.block_until_ready(_reference(x, params))

    # f32 operands + f32 output, VMEM-sized single h-tile: tight tolerance.
    f32_fn = jax.jit(functools.partial(decoder_block_forward, compute_dtype=jnp.float32))
    out_f32 = jax.block_until_ready(f32_fn(x, params))
    assert out_f32.shape == (N, Cout, 2 * H, 2 * W), out_f32.shape
    np.testing.assert_allclose(np.asarray(out_f32), np.asarray(ref), rtol=1e-4, atol=1e-4)

    # f32 operands, two h-tiles: exercises the halo / last-tile-mask / tiling path.
    f32_tiled_fn = jax.jit(functools.partial(
        decoder_block_forward, compute_dtype=jnp.float32, tile_h=8))
    out_f32_t = jax.block_until_ready(f32_tiled_fn(x, params))
    np.testing.assert_allclose(np.asarray(out_f32_t), np.asarray(ref), rtol=1e-4, atol=1e-4)

    # Default path: bf16 operands + bf16 output (halved writeback), f32 accumulation
    # and f32 intermediate y -> loose tolerance.
    bf16_fn = jax.jit(decoder_block_forward)
    out_bf16 = jax.block_until_ready(bf16_fn(x, params))
    assert out_bf16.shape == (N, Cout, 2 * H, 2 * W), out_bf16.shape
    assert out_bf16.dtype == jnp.bfloat16, out_bf16.dtype
    np.testing.assert_allclose(np.asarray(out_bf16.astype(jnp.float32)),
                               np.asarray(ref), rtol=5e-2, atol=5e-2)

    print("KERNEL_OK")
</pallas_src>

<mosaic_0001>
module attributes {stable_mosaic.version = 11 : i64} {
  func.func @_fused_decoder_block_kernel(%arg0: i32, %arg1: i32, %arg2: memref<1x1x8x304xf32, #tpu.memory_space<vmem>>, %arg3: memref<8x72xf32, #tpu.memory_space<vmem>>, %arg4: memref<8x1xf32, #tpu.memory_space<vmem>>, %arg5: memref<16x32xf32, #tpu.memory_space<vmem>>, %arg6: memref<16x1xf32, #tpu.memory_space<vmem>>, %arg7: memref<1x16x256xf32, #tpu.memory_space<vmem>>) attributes {dimension_semantics = [#tpu.dimension_semantics<parallel>, #tpu.dimension_semantics<parallel>], iteration_bounds = array<i64: 2, 1>, scalar_prefetch = 0 : i64, scratch_operands = 0 : i64, tpu.core_type = #tpu.core_type<tc>, window_params = [{transform_indices = @transform_0, window_bounds = array<i64: 1, 1, 8, 304>}, {pipeline_mode = #tpu.pipeline_mode<synchronous>, transform_indices = @transform_1, window_bounds = array<i64: 8, 72>}, {pipeline_mode = #tpu.pipeline_mode<synchronous>, transform_indices = @transform_2, window_bounds = array<i64: 8, 1>}, {pipeline_mode = #tpu.pipeline_mode<synchronous>, transform_indices = @transform_3, window_bounds = array<i64: 16, 32>}, {pipeline_mode = #tpu.pipeline_mode<synchronous>, transform_indices = @transform_4, window_bounds = array<i64: 16, 1>}, {transform_indices = @transform_5, window_bounds = array<i64: 1, 16, 256>}]} {
    %c0 = arith.constant 0 : index
    %c0_0 = arith.constant 0 : index
    %c0_1 = arith.constant 0 : index
    %c0_2 = arith.constant 0 : index
    %0 = vector.load %arg2[%c0, %c0_0, %c0_1, %c0_2] : memref<1x1x8x304xf32, #tpu.memory_space<vmem>>, vector<1x1x8x304xf32>
    %1 = vector.shape_cast %0 : vector<1x1x8x304xf32> to vector<8x304xf32>
    %2 = tpu.iota {dimensions = array<i32: 1>} : vector<1x304xi32>
    %c16_i32 = arith.constant 16 : i32
    %c0_i32 = arith.constant 0 : i32
    %3 = arith.cmpi eq, %c16_i32, %c0_i32 : i32
    %c1_i32 = arith.constant 1 : i32
    %4 = arith.select %3, %c1_i32, %c16_i32 : i32
    %5 = vector.broadcast %4 : i32 to vector<1x304xi32>
    %6 = arith.remsi %2, %5 : vector<1x304xi32>
    %c0_i32_3 = arith.constant 0 : i32
    %7 = vector.broadcast %c0_i32_3 : i32 to vector<1x304xi32>
    %8 = arith.cmpi ne, %6, %7 : vector<1x304xi32>
    %c0_i32_4 = arith.constant 0 : i32
    %9 = vector.broadcast %c0_i32_4 : i32 to vector<1x304xi32>
    %10 = arith.cmpi slt, %6, %9 : vector<1x304xi32>
    %c0_i32_5 = arith.constant 0 : i32
    %11 = arith.cmpi slt, %4, %c0_i32_5 : i32
    %12 = vector.broadcast %11 : i1 to vector<1x304xi1>
    %13 = vector.broadcast %12 : vector<1x304xi1> to vector<1x304xi1>
    %14 = arith.xori %10, %13 : vector<1x304xi1>
    %15 = arith.andi %14, %8 : vector<1x304xi1>
    %16 = vector.broadcast %4 : i32 to vector<1x304xi32>
    %17 = arith.addi %6, %16 : vector<1x304xi32>
    %18 = arith.select %15, %17, %6 : vector<1x304xi1>, vector<1x304xi32>
    %c15_i32 = arith.constant 15 : i32
    %19 = vector.broadcast %c15_i32 : i32 to vector<1x304xi32>
    %20 = arith.cmpi eq, %18, %19 : vector<1x304xi32>
    %cst = arith.constant 0.000000e+00 : f32
    %21 = vector.broadcast %cst : f32 to vector<8x304xf32>
    %22 = vector.shape_cast %20 : vector<1x304xi1> to vector<1x304xi1>
    %23 = vector.broadcast %22 : vector<1x304xi1> to vector<8x304xi1>
    %24 = arith.select %23, %21, %1 : vector<8x304xi1>, vector<8x304xf32>
    %c0_i32_6 = arith.constant 0 : i32
    %25 = vector.broadcast %c0_i32_6 : i32 to vector<1x304xi32>
    %26 = arith.cmpi eq, %18, %25 : vector<1x304xi32>
    %cst_7 = arith.constant 0.000000e+00 : f32
    %27 = vector.broadcast %cst_7 : f32 to vector<8x304xf32>
    %28 = vector.shape_cast %26 : vector<1x304xi1> to vector<1x304xi1>
    %29 = vector.broadcast %28 : vector<1x304xi1> to vector<8x304xi1>
    %30 = arith.select %29, %27, %1 : vector<8x304xi1>, vector<8x304xf32>
    %c1_i32_8 = arith.constant 1 : i32
    %31 = tpu.dynamic_rotate %24 by %c1_i32_8 dim 1 : vector<8x304xf32>, i32 -> vector<8x304xf32>
    %c303_i32 = arith.constant 303 : i32
    %32 = tpu.dynamic_rotate %30 by %c303_i32 dim 1 : vector<8x304xf32>, i32 -> vector<8x304xf32>
    %c289_i32 = arith.constant 289 : i32
    %33 = tpu.dynamic_rotate %24 by %c289_i32 dim 1 : vector<8x304xf32>, i32 -> vector<8x304xf32>
    %c288_i32 = arith.constant 288 : i32
    %34 = tpu.dynamic_rotate %1 by %c288_i32 dim 1 : vector<8x304xf32>, i32 -> vector<8x304xf32>
    %c287_i32 = arith.constant 287 : i32
    %35 = tpu.dynamic_rotate %30 by %c287_i32 dim 1 : vector<8x304xf32>, i32 -> vector<8x304xf32>
    %c273_i32 = arith.constant 273 : i32
    %36 = tpu.dynamic_rotate %24 by %c273_i32 dim 1 : vector<8x304xf32>, i32 -> vector<8x304xf32>
    %c272_i32 = arith.constant 272 : i32
    %37 = tpu.dynamic_rotate %1 by %c272_i32 dim 1 : vector<8x304xf32>, i32 -> vector<8x304xf32>
    %c271_i32 = arith.constant 271 : i32
    %38 = tpu.dynamic_rotate %30 by %c271_i32 dim 1 : vector<8x304xf32>, i32 -> vector<8x304xf32>
    %39 = tpu.concatenate %31, %1, %32, %33, %34, %35, %36, %37, %38 in 0 : vector<8x304xf32>, vector<8x304xf32>, vector<8x304xf32>, vector<8x304xf32>, vector<8x304xf32>, vector<8x304xf32>, vector<8x304xf32>, vector<8x304xf32>, vector<8x304xf32> -> vector<72x304xf32>
    %40 = vector.extract_strided_slice %39 {offsets = [0, 0], sizes = [72, 272], strides = [1, 1]} : vector<72x304xf32> to vector<72x272xf32>
    %c0_9 = arith.constant 0 : index
    %c0_10 = arith.constant 0 : index
    %41 = vector.load %arg3[%c0_9, %c0_10] : memref<8x72xf32, #tpu.memory_space<vmem>>, vector<8x72xf32>
    %cst_11 = arith.constant dense<0.000000e+00> : vector<8x272xf32>
    %42 = tpu.matmul %41, %40, %cst_11 {dimension_numbers = #tpu.dot_dimension_numbers<[1], [0], [0], [1], [0, 0, 1, 1], [], []>} : vector<8x72xf32>, vector<72x272xf32>, vector<8x272xf32> -> vector<8x272xf32>
    %c0_12 = arith.constant 0 : index
    %c0_13 = arith.constant 0 : index
    %43 = vector.load %arg4[%c0_12, %c0_13] : memref<8x1xf32, #tpu.memory_space<vmem>>, vector<8x1xf32>
    %44 = vector.broadcast %43 : vector<8x1xf32> to vector<8x272xf32>
    %45 = arith.addf %42, %44 : vector<8x272xf32>
    %cst_14 = arith.constant 0.000000e+00 : f32
    %46 = vector.broadcast %cst_14 : f32 to vector<8x272xf32>
    %47 = arith.maximumf %45, %46 : vector<8x272xf32>
    %c0_i32_15 = arith.constant 0 : i32
    %48 = arith.cmpi eq, %arg1, %c0_i32_15 : i32
    %49 = vector.extract_strided_slice %2 {offsets = [0, 0], sizes = [1, 272], strides = [1, 1]} : vector<1x304xi32> to vector<1x272xi32>
    %c256_i32 = arith.constant 256 : i32
    %50 = vector.broadcast %c256_i32 : i32 to vector<1x272xi32>
    %51 = arith.cmpi slt, %49, %50 : vector<1x272xi32>
    %true = arith.constant true
    %52 = arith.xori %48, %true : i1
    %53 = vector.broadcast %52 : i1 to vector<1x272xi1>
    %54 = arith.ori %51, %53 : vector<1x272xi1>
    %cst_16 = arith.constant 0.000000e+00 : f32
    %55 = vector.shape_cast %54 : vector<1x272xi1> to vector<1x272xi1>
    %56 = vector.broadcast %55 : vector<1x272xi1> to vector<8x272xi1>
    %57 = vector.broadcast %cst_16 : f32 to vector<8x272xf32>
    %58 = arith.select %56, %47, %57 : vector<8x272xi1>, vector<8x272xf32>
    %59 = vector.extract_strided_slice %18 {offsets = [0, 0], sizes = [1, 272], strides = [1, 1]} : vector<1x304xi32> to vector<1x272xi32>
    %c0_i32_17 = arith.constant 0 : i32
    %60 = vector.broadcast %c0_i32_17 : i32 to vector<1x272xi32>
    %61 = arith.cmpi eq, %59, %60 : vector<1x272xi32>
    %cst_18 = arith.constant 0.000000e+00 : f32
    %62 = vector.broadcast %cst_18 : f32 to vector<8x272xf32>
    %63 = vector.shape_cast %61 : vector<1x272xi1> to vector<1x272xi1>
    %64 = vector.broadcast %63 : vector<1x272xi1> to vector<8x272xi1>
    %65 = arith.select %64, %62, %58 : vector<8x272xi1>, vector<8x272xf32>
    %c271_i32_19 = arith.constant 271 : i32
    %66 = tpu.dynamic_rotate %65 by %c271_i32_19 dim 1 : vector<8x272xf32>, i32 -> vector<8x272xf32>
    %c256_i32_20 = arith.constant 256 : i32
    %67 = tpu.dynamic_rotate %58 by %c256_i32_20 dim 1 : vector<8x272xf32>, i32 -> vector<8x272xf32>
    %c255_i32 = arith.constant 255 : i32
    %68 = tpu.dynamic_rotate %65 by %c255_i32 dim 1 : vector<8x272xf32>, i32 -> vector<8x272xf32>
    %69 = tpu.concatenate %58, %66, %67, %68 in 0 : vector<8x272xf32>, vector<8x272xf32>, vector<8x272xf32>, vector<8x272xf32> -> vector<32x272xf32>
    %70 = vector.extract_strided_slice %69 {offsets = [0, 0], sizes = [32, 256], strides = [1, 1]} : vector<32x272xf32> to vector<32x256xf32>
    %c0_21 = arith.constant 0 : index
    %c0_22 = arith.constant 0 : index
    %71 = vector.load %arg5[%c0_21, %c0_22] : memref<16x32xf32, #tpu.memory_space<vmem>>, vector<16x32xf32>
    %cst_23 = arith.constant dense<0.000000e+00> : vector<16x256xf32>
    %72 = tpu.matmul %71, %70, %cst_23 {dimension_numbers = #tpu.dot_dimension_numbers<[1], [0], [0], [1], [0, 0, 1, 1], [], []>} : vector<16x32xf32>, vector<32x256xf32>, vector<16x256xf32> -> vector<16x256xf32>
    %c0_24 = arith.constant 0 : index
    %c0_25 = arith.constant 0 : index
    %73 = vector.load %arg6[%c0_24, %c0_25] : memref<16x1xf32, #tpu.memory_space<vmem>>, vector<16x1xf32>
    %74 = vector.broadcast %73 : vector<16x1xf32> to vector<16x256xf32>
    %75 = arith.addf %72, %74 : vector<16x256xf32>
    %cst_26 = arith.constant 0.000000e+00 : f32
    %76 = vector.broadcast %cst_26 : f32 to vector<16x256xf32>
    %77 = arith.maximumf %75, %76 : vector<16x256xf32>
    %c0_27 = arith.constant 0 : index
    %c0_28 = arith.constant 0 : index
    %c0_29 = arith.constant 0 : index
    %78 = vector.load %arg7[%c0_27, %c0_28, %c0_29] : memref<1x16x256xf32, #tpu.memory_space<vmem>>, vector<1x16x256xf32>
    %79 = vector.shape_cast %78 : vector<1x16x256xf32> to vector<16x256xf32>
    %80 = vector.shape_cast %77 : vector<16x256xf32> to vector<1x16x256xf32>
    tpu.vector_store %arg7[%c0_27, %c0_28, %c0_29], %80 {strides = array<i32>} : memref<1x16x256xf32, #tpu.memory_space<vmem>>, vector<1x16x256xf32>,
    return
  }
  func.func @transform_0(%arg0: i32, %arg1: i32) -> (i32, i32, i32, i32) {
    %c0_i32 = arith.constant 0 : i32
    %c0_i32_0 = arith.constant 0 : i32
    %c0_i32_1 = arith.constant 0 : i32
    return %arg0, %arg1, %c0_i32, %c0_i32_0 : i32, i32, i32, i32
  }
  func.func @transform_1(%arg0: i32, %arg1: i32) -> (i32, i32) {
    %c0_i32 = arith.constant 0 : i32
    %c0_i32_0 = arith.constant 0 : i32
    %c0_i32_1 = arith.constant 0 : i32
    return %c0_i32, %c0_i32_0 : i32, i32
  }
  func.func @transform_2(%arg0: i32, %arg1: i32) -> (i32, i32) {
    %c0_i32 = arith.constant 0 : i32
    %c0_i32_0 = arith.constant 0 : i32
    %c0_i32_1 = arith.constant 0 : i32
    return %c0_i32, %c0_i32_0 : i32, i32
  }
  func.func @transform_3(%arg0: i32, %arg1: i32) -> (i32, i32) {
    %c0_i32 = arith.constant 0 : i32
    %c0_i32_0 = arith.constant 0 : i32
    %c0_i32_1 = arith.constant 0 : i32
    return %c0_i32, %c0_i32_0 : i32, i32
  }
  func.func @transform_4(%arg0: i32, %arg1: i32) -> (i32, i32) {
    %c0_i32 = arith.constant 0 : i32
    %c0_i32_0 = arith.constant 0 : i32
    %c0_i32_1 = arith.constant 0 : i32
    return %c0_i32, %c0_i32_0 : i32, i32
  }
  func.func @transform_5(%arg0: i32, %arg1: i32) -> (i32, i32, i32) {
    %c0_i32 = arith.constant 0 : i32
    %c0_i32_0 = arith.constant 0 : i32
    return %arg0, %c0_i32, %arg1 : i32, i32, i32
  }
}

</mosaic_0001>

<llo_original>
// kernel: tile.0
$region0: #{tile.0}
  %s0 = inlined_call_operand.vmem [shape: f32[4,4], index: 0, kind: input, shape index: {}]
  %s1 = inlined_call_operand.vmem [shape: f32[16,1], index: 1, kind: output, shape index: {}]
  $region1: #{tile.0} parent=0
    #allocation0 [shape = 'u8[4096]{0}', space=vmem, size = 0x1000, scoped, tag = 'scoped mem for input reshape']
    %s3 = ssub.s32 16, 1
    %v4 = vld [vmem:[%s0] sm:%s3]
    %5 = vst [vmem:[#allocation0] sm:%s3] %v4
    %v6 = vld [vmem:[#allocation0] sm:$0xf]
    %vm7 = vcmask 7168
    %8 = vst.msk [vmem:[%s1] ss:$4 sm:$0xf] %vm7, %v6
    %v9 = vld [vmem:[#allocation0] sm:$0xf]
    %10 = vrot.lane.b32.xlu0 %v9, 127
    %v11 = vpop.permute.xlu0 %10
    %vm12 = vcmask 7168
    %s13 = scalar_lea.vmem %s1, 1
    %14 = vst.msk [vmem:[%s13] ss:$4 sm:$0xf] %vm12, %v11
    %v15 = vld [vmem:[#allocation0] sm:$0xf]
    %16 = vrot.lane.b32.xlu0 %v15, 126
    %v17 = vpop.permute.xlu0 %16
    %vm18 = vcmask 7168
    %s19 = scalar_lea.vmem %s1, 2
    %20 = vst.msk [vmem:[%s19] ss:$4 sm:$0xf] %vm18, %v17
    %v21 = vld [vmem:[#allocation0] sm:$0xf]
    %22 = vrot.lane.b32.xlu0 %v21, 125
    %v23 = vpop.permute.xlu0 %22
    %vm24 = vcmask 7168
    %s25 = scalar_lea.vmem %s1, 3
    %26 = vst.msk [vmem:[%s25] ss:$4 sm:$0xf] %vm24, %v23

// kernel: tile.8
$region0: #{tile.8}
  #allocation2 [shape = 's32[1]{0}', space=sflag, size = 0x4, scoped, tag = 'scoped memory for tile.8']
  %s0 = inlined_call_operand.hbm [shape: f32[4], index: 0, kind: input, shape index: {}]
  %s1 = inlined_call_operand.vmem [shape: f32[4,4], index: 1, kind: output, shape index: {}]
  $region1: #{tile.8} parent=0
    #allocation0 [shape = 'u8[512]{0}', space=vmem, size = 0x400, scoped, tag = 'operand span for operand 0']
    #allocation1 [shape = 's32[1]{0}', space=sflag, size = 0x4, scoped, tag = 'scoped memory for tile.8']
    %2 = vsyncpa [#allocation1], 0
    // Predicated region
    $region2: #{tile.8} parent=1 // pred_check
      _
    $region3: #{tile.8} parent=1 // pred_check_branch
      %4 = sbr.rel (0) target = $region5
    $region4: #{tile.8} parent=1 // pred_region
      %6 = vsyncadd [#allocation1], 0
      %s8 = sshll.u32 %s0, 4
      %s9 = int_to_ptr.hbm [resolvable:$true] %s8
      %s10 = sshll.u32 [#allocation0], 4
      %s11 = int_to_ptr.vmem [resolvable:$true] %s10
      %13 = dma.hbm_to_vmem [thread:$0]  %s9, 16, %s11, [#allocation1]
    $region5: #{tile.8} parent=1 // pred_fallthru
      _
    // Predicated region
    $region6: #{tile.8} parent=1 // pred_check
      _
    $region7: #{tile.8} parent=1 // pred_check_branch
      %15 = sbr.rel (0) target = $region9
    $region8: #{tile.8} parent=1 // pred_region
      %17 = dma.done [#allocation1], 16
    $region9: #{tile.8} parent=1 // pred_fallthru
      _
    %v18 = vld [vmem:[#allocation0] ss:$0 sm:$0xff]
    %19 = vst [vmem:[%s1] sm:$0xf] %v18
    %20 = vsyncpa [#allocation1], 1

// kernel: decoder_block_forward.1
$region0: #{decoder_block_forward.1}
  #allocation0 [shape = 'u32[]', space=smem, size = 0x4, offset = 0x4, fixed_abs, tag = 'smem constant byte address 0x4 - core index']
  #allocation1 [shape = 'u32[72,128]{1,0:T(1,128)}', space=vmem, size = 0x9000, scoped, tag = 'internal scratch']
  %s0 = inlined_call_operand.vmem [shape: f32[2,1,8,304], index: 0, kind: input, shape index: {}]
  %s1 = inlined_call_operand.vmem [shape: f32[8,72], index: 1, kind: input, shape index: {}]
  %s2 = inlined_call_operand.vmem [shape: f32[8,1], index: 2, kind: input, shape index: {}]
  %s3 = inlined_call_operand.vmem [shape: f32[16,32], index: 3, kind: input, shape index: {}]
  %s4 = inlined_call_operand.vmem [shape: f32[16,1], index: 4, kind: input, shape index: {}]
  %s5 = inlined_call_operand.vmem [shape: f32[2,16,256], index: 5, kind: output, shape index: {}]
  %s6 = sld [smem:[#allocation0]]
  $region53: #{decoder_block_forward.1} parent=0
    _
  %s8 = ssub.s32 1, %s6
  %s9 = scalar_select 0, %s8, %s6
  loop: start=0, step=1, limit=4
  $region2: #{decoder_block_forward.1} parent=0 // loop_pre_header
    _
  $region3: #{decoder_block_forward.1} parent=0 // loop_header
    %s11 = sphi 0, %s15
    %p12 = scmp.ge.s32.totalorder %s11, 4
    %s18 = sphi 0, %s30
    %s19 = sphi 0, %s26
    %s20 = sphi 0, %s18
    %s21 = sphi 0, %s19
    %s22 = sphi 0, %s20
    %s23 = sphi 0, %s21
    %s35 = sphi 0, %s37
    %s38 = sphi 0, %s35
    %s39 = sphi 0, %s38
    %s55 = sphi 0, %s39
    %s59 = sphi 0, %s59
    %s61 = sphi 0, %s59
    %s62 = sphi 0, %s61
    %s76 = sphi 0, %s62
    %s80 = sphi 0, %s80
    %s82 = sphi 0, %s80
    %s83 = sphi 0, %s82
    %s97 = sphi 0, %s83
    %s101 = sphi 0, %s101
    %s103 = sphi 0, %s101
    %s104 = sphi 0, %s103
    %s118 = sphi 0, %s104
    %s122 = sphi 0, %s122
    %s124 = sphi 0, %s122
    %s125 = sphi 0, %s124
    %s139 = sphi 0, %s125
    %s147 = sphi 0, %s149
    %s150 = sphi 0, %s147
    %s151 = sphi 0, %s150
    %s167 = sphi 0, %s151
  $region4: #{decoder_block_forward.1} parent=0 // loop_header_branch
    %14 = sbr.rel (%p12) target = $region8
  $region5: #{decoder_block_forward.1} parent=0 // loop_body
    %s16 = ssub.s32 %s11, 1
    %s17 = ssub.s32 %s11, 2
    %s24 = sadd.s32 1, %s19
    %p25 = scmp.ge.s32.totalorder %s24, 1
    %s26 = scalar_select %p25, 0, %s24
    %s27 = sadd.s32 1, %s18
    %s28 = scalar_select %p25, %s27, %s18
    %p29 = scmp.ge.s32.totalorder %s28, 2
    %s30 = scalar_select %p29, 0, %s28
    %s31 = ssub.s32 %s18, %s30
    %s32 = ssub.s32 %s19, %s26
    %s33 = sor.u32 %s31, %s32
    %p34 = scmp.eq.s32.totalorder %s33, 0
    %s36 = sadd.s32 %s35, 1
    %s37 = scalar_select %p34, %s35, %s36
    %p40 = pneg %p34
    %p41 = scmp.eq.s32.totalorder %s11, 1
    %p42 = por %p40, %p41
    %p43 = scmp.ne.s32.totalorder %s35, %s38
    %p44 = scmp.eq.s32.totalorder %s11, 0
    %p45 = por %p43, %p44
    %p46 = scmp.ne.s32.totalorder %s35, %s38
    %p47 = scmp.eq.s32.totalorder %s16, 1
    %p48 = por %p46, %p47
    %p49 = scmp.ne.s32.totalorder %s38, %s39
    %p50 = scmp.eq.s32.totalorder %s16, 0
    %p51 = por %p49, %p50
    %p52 = scmp.ne.s32.totalorder %s38, %s39
    %p53 = scmp.eq.s32.totalorder %s17, 1
    %p54 = por %p52, %p53
    %p56 = scmp.ne.s32.totalorder %s39, %s55
    %p57 = scmp.eq.s32.totalorder %s17, 0
    %p58 = por %p56, %p57
    %s60 = sadd.s32 %s59, 1
    %p63 = scmp.eq.s32.totalorder %s11, 1
    %p64 = scmp.ne.s32.totalorder %s59, %s61
    %p65 = scmp.eq.s32.totalorder %s11, 0
    %p66 = por %p64, %p65
    %p67 = scmp.ne.s32.totalorder %s59, %s61
    %p68 = scmp.eq.s32.totalorder %s16, 1
    %p69 = por %p67, %p68
    %p70 = scmp.ne.s32.totalorder %s61, %s62
    %p71 = scmp.eq.s32.totalorder %s16, 0
    %p72 = por %p70, %p71
    %p73 = scmp.ne.s32.totalorder %s61, %s62
    %p74 = scmp.eq.s32.totalorder %s17, 1
    %p75 = por %p73, %p74
    %p77 = scmp.ne.s32.totalorder %s62, %s76
    %p78 = scmp.eq.s32.totalorder %s17, 0
    %p79 = por %p77, %p78
    %s81 = sadd.s32 %s80, 1
    %p84 = scmp.eq.s32.totalorder %s11, 1
    %p85 = scmp.ne.s32.totalorder %s80, %s82
    %p86 = scmp.eq.s32.totalorder %s11, 0
    %p87 = por %p85, %p86
    %p88 = scmp.ne.s32.totalorder %s80, %s82
    %p89 = scmp.eq.s32.totalorder %s16, 1
    %p90 = por %p88, %p89
    %p91 = scmp.ne.s32.totalorder %s82, %s83
    %p92 = scmp.eq.s32.totalorder %s16, 0
    %p93 = por %p91, %p92
    %p94 = scmp.ne.s32.totalorder %s82, %s83
    %p95 = scmp.eq.s32.totalorder %s17, 1
    %p96 = por %p94, %p95
    %p98 = scmp.ne.s32.totalorder %s83, %s97
    %p99 = scmp.eq.s32.totalorder %s17, 0
    %p100 = por %p98, %p99
    %s102 = sadd.s32 %s101, 1
    %p105 = scmp.eq.s32.totalorder %s11, 1
    %p106 = scmp.ne.s32.totalorder %s101, %s103
    %p107 = scmp.eq.s32.totalorder %s11, 0
    %p108 = por %p106, %p107
    %p109 = scmp.ne.s32.totalorder %s101, %s103
    %p110 = scmp.eq.s32.totalorder %s16, 1
    %p111 = por %p109, %p110
    %p112 = scmp.ne.s32.totalorder %s103, %s104
    %p113 = scmp.eq.s32.totalorder %s16, 0
    %p114 = por %p112, %p113
    %p115 = scmp.ne.s32.totalorder %s103, %s104
    %p116 = scmp.eq.s32.totalorder %s17, 1
    %p117 = por %p115, %p116
    %p119 = scmp.ne.s32.totalorder %s104, %s118
    %p120 = scmp.eq.s32.totalorder %s17, 0
    %p121 = por %p119, %p120
    %s123 = sadd.s32 %s122, 1
    %p126 = scmp.eq.s32.totalorder %s11, 1
    %p127 = scmp.ne.s32.totalorder %s122, %s124
    %p128 = scmp.eq.s32.totalorder %s11, 0
    %p129 = por %p127, %p128
    %p130 = scmp.ne.s32.totalorder %s122, %s124
    %p131 = scmp.eq.s32.totalorder %s16, 1
    %p132 = por %p130, %p131
    %p133 = scmp.ne.s32.totalorder %s124, %s125
    %p134 = scmp.eq.s32.totalorder %s16, 0
    %p135 = por %p133, %p134
    %p136 = scmp.ne.s32.totalorder %s124, %s125
    %p137 = scmp.eq.s32.totalorder %s17, 1
    %p138 = por %p136, %p137
    %p140 = scmp.ne.s32.totalorder %s125, %s139
    %p141 = scmp.eq.s32.totalorder %s17, 0
    %p142 = por %p140, %p141
    %s143 = ssub.s32 %s18, %s30
    %s144 = ssub.s32 %s19, %s26
    %s145 = sor.u32 %s143, %s144
    %p146 = scmp.eq.s32.totalorder %s145, 0
    %s148 = sadd.s32 %s147, 1
    %s149 = scalar_select %p146, %s147, %s148
    %p152 = pneg %p146
    %p153 = scmp.eq.s32.totalorder %s11, 1
    %p154 = por %p152, %p153
    %p155 = scmp.ne.s32.totalorder %s147, %s150
    %p156 = scmp.eq.s32.totalorder %s11, 0
    %p157 = por %p155, %p156
    %p158 = scmp.ne.s32.totalorder %s147, %s150
    %p159 = scmp.eq.s32.totalorder %s16, 1
    %p160 = por %p158, %p159
    %p161 = scmp.ne.s32.totalorder %s150, %s151
    %p162 = scmp.eq.s32.totalorder %s16, 0
    %p163 = por %p161, %p162
    %p164 = scmp.ne.s32.totalorder %s150, %s151
    %p165 = scmp.eq.s32.totalorder %s17, 1
    %p166 = por %p164, %p165
    %p168 = scmp.ne.s32.totalorder %s151, %s167
    %p169 = scmp.eq.s32.totalorder %s17, 0
    %p170 = por %p168, %p169
    %p171 = scmp.le.s32.totalorder 1, %s11
    %p172 = scmp.lt.s32.totalorder %s11, 3
    %p173 = pnand %p171, %p172
    %p174 = pneg %p173
    // Predicated region
    $region9: #{decoder_block_forward.1} parent=5 // pred_check
      _
    $region10: #{decoder_block_forward.1} parent=5 // pred_check_branch
      %176 = sbr.rel (%p173) target = $region12
    $region11: #{decoder_block_forward.1} parent=5 // pred_region
      %s177 = ssub.s32 %s11, 1
      // Predicated region
      $region13: #{decoder_block_forward.1} parent=11 // pred_check
        %p178 = pneg %p72
      $region14: #{decoder_block_forward.1} parent=11 // pred_check_branch
        %180 = sbr.rel (%p178) target = $region16
      $region15: #{decoder_block_forward.1} parent=11 // pred_region
        _
      $region16: #{decoder_block_forward.1} parent=11 // pred_fallthru
        _
      // Predicated region
      $region17: #{decoder_block_forward.1} parent=11 // pred_check
        %p181 = pneg %p93
      $region18: #{decoder_block_forward.1} parent=11 // pred_check_branch
        %183 = sbr.rel (%p181) target = $region20
      $region19: #{decoder_block_forward.1} parent=11 // pred_region
        _
      $region20: #{decoder_block_forward.1} parent=11 // pred_fallthru
        _
      // Predicated region
      $region21: #{decoder_block_forward.1} parent=11 // pred_check
        %p184 = pneg %p114
      $region22: #{decoder_block_forward.1} parent=11 // pred_check_branch
        %186 = sbr.rel (%p184) target = $region24
      $region23: #{decoder_block_forward.1} parent=11 // pred_region
        _
      $region24: #{decoder_block_forward.1} parent=11 // pred_fallthru
        _
      // Predicated region
      $region25: #{decoder_block_forward.1} parent=11 // pred_check
        %p187 = pneg %p135
      $region26: #{decoder_block_forward.1} parent=11 // pred_check_branch
        %189 = sbr.rel (%p187) target = $region28
      $region27: #{decoder_block_forward.1} parent=11 // pred_region
        _
      $region28: #{decoder_block_forward.1} parent=11 // pred_fallthru
        _
    $region12: #{decoder_block_forward.1} parent=5 // pred_fallthru
      _
    %p190 = scmp.lt.s32.totalorder %s11, 2
    // Predicated region
    $region29: #{decoder_block_forward.1} parent=5 // pred_check
      %p191 = pneg %p190
    $region30: #{decoder_block_forward.1} parent=5 // pred_check_branch
      %193 = sbr.rel (%p191) target = $region32
    $region31: #{decoder_block_forward.1} parent=5 // pred_region
      // Predicated region
      $region33: #{decoder_block_forward.1} parent=31 // pred_check
        %p194 = pneg %p45
      $region34: #{decoder_block_forward.1} parent=31 // pred_check_branch
        %196 = sbr.rel (%p194) target = $region36
      $region35: #{decoder_block_forward.1} parent=31 // pred_region
        %p197 = scmp.lt.s32.totalorder %s18, 1
        %s198 = scalar_select %p197, %s18, 1
        %p199 = scmp.lt.s32.totalorder %s19, 0
        %s200 = scalar_select %p199, %s19, 0
        %s201 = smul.addr %s200, 3
        %s202 = smul.addr %s198, 3
        %s203 = sadd.s32 %s201, %s202
        %s204 = smul.addr %s203, 8
        %s205 = scalar_lea.vmem %s0, %s204
      $region36: #{decoder_block_forward.1} parent=31 // pred_fallthru
        _
    $region32: #{decoder_block_forward.1} parent=5 // pred_fallthru
      _
    %p206 = scmp.le.s32.totalorder 1, %s11
    %p207 = scmp.lt.s32.totalorder %s11, 3
    %p208 = pnand %p206, %p207
    %p209 = pneg %p208
    // Predicated region
    $region37: #{decoder_block_forward.1} parent=5 // pred_check
      _
    $region38: #{decoder_block_forward.1} parent=5 // pred_check_branch
      %211 = sbr.rel (%p208) target = $region40
    $region39: #{decoder_block_forward.1} parent=5 // pred_region
      %s212 = ssub.s32 %s11, 1
      %p213 = scmp.lt.s32.totalorder %s20, 1
      %s214 = scalar_select %p213, %s20, 1
      %p215 = scmp.lt.s32.totalorder %s21, 0
      %s216 = scalar_select %p215, %s21, 0
      %s217 = smul.addr %s216, 3
      %s218 = smul.addr %s214, 3
      %s219 = sadd.s32 %s217, %s218
      %s220 = smul.addr %s219, 8
      %s221 = scalar_lea.vmem %s0, %s220
      %p222 = pneg %p51
      %p223 = pneg %p48
      %p224 = pneg %p72
      %p225 = pneg %p69
      %p226 = pneg %p93
      %p227 = pneg %p90
      %p228 = pneg %p114
      %p229 = pneg %p111
      %p230 = pneg %p135
      %p231 = pneg %p132
      %p232 = pneg %p163
      %p233 = pneg %p160
      %s234 = smul.u32 2, %s21
      %p235 = scmp.lt.s32.totalorder %s20, 1
      %s236 = scalar_select %p235, %s20, 1
      %p237 = scmp.lt.s32.totalorder %s234, 1
      %s238 = scalar_select %p237, %s234, 1
      %s239 = smul.addr %s236, 4
      %s240 = sadd.s32 %s238, %s239
      %s241 = smul.addr %s240, 8
      %s242 = scalar_lea.vmem %s5, %s241
      %p243 = scmp.lt.s32.totalorder %s20, 1
      %s244 = scalar_select %p243, %s20, 1
      %p245 = scmp.lt.s32.totalorder %s21, 0
      %s246 = scalar_select %p245, %s21, 0
      %s247 = smul.addr %s246, 3
      %s248 = smul.addr %s244, 3
      %s249 = sadd.s32 %s247, %s248
      %s250 = smul.addr %s249, 8
      %s251 = scalar_lea.vmem %s0, %s250
      %s252 = smul.u32 2, %s21
      %p253 = scmp.lt.s32.totalorder %s20, 1
      %s254 = scalar_select %p253, %s20, 1
      %p255 = scmp.lt.s32.totalorder %s252, 1
      %s256 = scalar_select %p255, %s252, 1
      %s257 = smul.addr %s254, 4
      %s258 = sadd.s32 %s256, %s257
      %s259 = smul.addr %s258, 8
      %s260 = scalar_lea.vmem %s5, %s259
      %s261 = smul.u32 2, %s21
      %v262 = vld [vmem:[%s251] sm:$0xff]
      %v263 = vld [vmem:[%s251 + $0x8] sm:$0xff]
      %v264 = vld [vmem:[%s251 + $0x10] sm:$0xff]
      %v265 = vlaneseq
      %v266 = vand.u32 %v265, 127
      %v267 = vadd.s32 %v266, 128
      %v268 = vadd.s32 %v266, 256
      %vm269 = vcmp.lt.s32.totalorder %v266, 0
      %v270 = vsub.s32 0, %v266
      %v271 = vsel %vm269, %v270, %v266
      %v272 = vshrl.u32 %v271, 4
      %v273 = vand.u32 %v271, 15
      %v274 = vsub.s32 0, %v273
      %v275 = vsel %vm269, %v274, %v273
      %vm276 = vcmp.lt.s32.totalorder %v267, 0
      %v277 = vsub.s32 0, %v267
      %v278 = vsel %vm276, %v277, %v267
      %v279 = vshrl.u32 %v278, 4
      %v280 = vand.u32 %v278, 15
      %v281 = vsub.s32 0, %v280
      %v282 = vsel %vm276, %v281, %v280
      %vm283 = vcmp.lt.s32.totalorder %v268, 0
      %v284 = vsub.s32 0, %v268
      %v285 = vsel %vm283, %v284, %v268
      %v286 = vshrl.u32 %v285, 4
      %v287 = vand.u32 %v285, 15
      %v288 = vsub.s32 0, %v287
      %v289 = vsel %vm283, %v288, %v287
      %vm290 = vcmp.ne.s32.totalorder %v275, 0
      %vm291 = vcmp.ne.s32.totalorder %v282, 0
      %vm292 = vcmp.ne.s32.totalorder %v289, 0
      %vm293 = vcmp.lt.s32.totalorder %v275, 0
      %vm294 = vcmp.lt.s32.totalorder %v282, 0
      %vm295 = vcmp.lt.s32.totalorder %v289, 0
      %vm296 = vmand %vm293, %vm290
      %vm297 = vmand %vm294, %vm291
      %vm298 = vmand %vm295, %vm292
      %v299 = vadd.s32 %v275, 16
      %v300 = vadd.s32 %v282, 16
      %v301 = vadd.s32 %v289, 16
      %v302 = vsel %vm296, %v299, %v275
      %v303 = vsel %vm297, %v300, %v282
      %v304 = vsel %vm298, %v301, %v289
      %vm305 = vcmp.eq.s32.totalorder %v302, 15
      %vm306 = vcmp.eq.s32.totalorder %v303, 15
      %vm307 = vcmp.eq.s32.totalorder %v304, 15
      %v308 = vsel %vm305, 1, 0
      %v309 = vsel %vm306, 1, 0
      %v310 = vsel %vm307, 1, 0
      %vm311 = vcmp.eq.s32.totalorder %v308, 1
      %vm312 = vcmp.eq.s32.totalorder %v309, 1
      %vm313 = vcmp.eq.s32.totalorder %v310, 1
      %v314 = vsel %vm311, 0.0, %v262
      %v315 = vsel %vm312, 0.0, %v263
      %v316 = vsel %vm313, 0.0, %v264
      %vm317 = vcmp.eq.s32.totalorder %v302, 0
      %vm318 = vcmp.eq.s32.totalorder %v303, 0
      %vm319 = vcmp.eq.s32.totalorder %v304, 0
      %v320 = vsel %vm317, 1, 0
      %v321 = vsel %vm318, 1, 0
      %v322 = vsel %vm319, 1, 0
      %vm323 = vcmp.eq.s32.totalorder %v320, 1
      %vm324 = vcmp.eq.s32.totalorder %v321, 1
      %vm325 = vcmp.eq.s32.totalorder %v322, 1
      %v326 = vsel %vm323, 0.0, %v262
      %v327 = vsel %vm324, 0.0, %v263
      %v328 = vsel %vm325, 0.0, %v264
      %vm329 = vcmask 1047936
      %330 = vrot.lane.b32.xlu0 %v314, 48
      %v331 = vpop.permute.xlu0 %330
      %v332 = vsel %vm329, %v331, %v316
      %333 = vrot.lane.b32.xlu0 %v315, 48
      %v334 = vpop.permute.xlu0 %333
      %335 = vrot.lane.b32.xlu0 %v332, 48
      %v336 = vpop.permute.xlu0 %335
      %v337 = vsel %vm329, %v334, %v331
      %v338 = vsel %vm329, %v336, %v334
      %339 = vrot.lane.b32.xlu0 %v326, 48
      %v340 = vpop.permute.xlu0 %339
      %v341 = vsel %vm329, %v340, %v328
      %342 = vrot.lane.b32.xlu0 %v262, 48
      %v343 = vpop.permute.xlu0 %342
      %v344 = vsel %vm329, %v343, %v264
      %348 = vrot.lane.b32.xlu0 %v262, 47
      %v349 = vpop.permute.xlu0 %348
      %350 = vrot.lane.b32.xlu0 %v263, 47
      %v351 = vpop.permute.xlu0 %350
      %352 = vrot.lane.b32.xlu0 %v264, 47
      %v353 = vpop.permute.xlu0 %352
      %vm354 = vcmask 384000
      %v355 = vsel %vm354, %v349, %v351
      %v356 = vsel %vm354, %v351, %v353
      %360 = vrot.lane.b32.xlu0 %v326, 46
      %v361 = vpop.permute.xlu0 %360
      %362 = vrot.lane.b32.xlu0 %v327, 46
      %v363 = vpop.permute.xlu0 %362
      %364 = vrot.lane.b32.xlu0 %v341, 46
      %v365 = vpop.permute.xlu0 %364
      %vm366 = vcmask 375808
      %v367 = vsel %vm366, %v361, %v363
      %v368 = vsel %vm366, %v363, %v365
      %372 = vrot.lane.b32.xlu0 %v314, 32
      %v373 = vpop.permute.xlu0 %372
      %374 = vrot.lane.b32.xlu0 %v315, 32
      %v375 = vpop.permute.xlu0 %374
      %376 = vrot.lane.b32.xlu0 %v332, 32
      %v377 = vpop.permute.xlu0 %376
      %vm378 = vcmask 261120
      %v379 = vsel %vm378, %v373, %v375
      %v380 = vsel %vm378, %v375, %v377
      %382 = vrot.lane.b32.xlu0 %v262, 31
      %v383 = vpop.permute.xlu0 %382
      %384 = vrot.lane.b32.xlu0 %v263, 31
      %v385 = vpop.permute.xlu0 %384
      %386 = vrot.lane.b32.xlu0 %v344, 31
      %v387 = vpop.permute.xlu0 %386
      %vm388 = vcmask 252928
      %v389 = vsel %vm388, %v383, %v385
      %v390 = vsel %vm388, %v385, %v387
      %391 = vrot.lane.b32.xlu0 %v326, 30
      %v392 = vpop.permute.xlu0 %391
      %393 = vrot.lane.b32.xlu0 %v327, 30
      %v394 = vpop.permute.xlu0 %393
      %395 = vrot.lane.b32.xlu0 %v341, 30
      %v396 = vpop.permute.xlu0 %395
      %vm397 = vcmask 244736
      %v398 = vsel %vm397, %v392, %v394
      %v399 = vsel %vm397, %v394, %v396
      %400 = vrot.lane.b32.xlu0 %v314, 16
      %v401 = vpop.permute.xlu0 %400
      %402 = vrot.lane.b32.xlu0 %v315, 16
      %v403 = vpop.permute.xlu0 %402
      %404 = vrot.lane.b32.xlu0 %v332, 16
      %v405 = vpop.permute.xlu0 %404
      %vm406 = vcmask 130048
      %v407 = vsel %vm406, %v401, %v403
      %v408 = vsel %vm406, %v403, %v405
      %409 = vrot.lane.b32.xlu0 %v262, 15
      %v410 = vpop.permute.xlu0 %409
      %411 = vrot.lane.b32.xlu0 %v263, 15
      %v412 = vpop.permute.xlu0 %411
      %413 = vrot.lane.b32.xlu0 %v344, 15
      %v414 = vpop.permute.xlu0 %413
      %vm415 = vcmask 121856
      %v416 = vsel %vm415, %v410, %v412
      %v417 = vsel %vm415, %v412, %v414
      %418 = vrot.lane.b32.xlu0 %v326, 14
      %v419 = vpop.permute.xlu0 %418
      %420 = vrot.lane.b32.xlu0 %v327, 14
      %v421 = vpop.permute.xlu0 %420
      %422 = vrot.lane.b32.xlu0 %v341, 14
      %v423 = vpop.permute.xlu0 %422
      %vm424 = vcmask 113664
      %v425 = vsel %vm424, %v419, %v421
      %v426 = vsel %vm424, %v421, %v423
      %v427 = vld [vmem:[%s1] sm:$0xff]
      %v428 = vld [vmem:[%s2] sm:$0xff]
      %430 = vset.pattern.permute.xlu0 0
      %431 = vperm.xlu0 %430, %v428
      %v432 = vpop.permute.xlu0 %431
      %436 = vrot.lane.b32.xlu0 %v332, 81
      %v437 = vpop.permute.xlu0 %436
      %438 = vrot.lane.b32.xlu0 %v337, 81
      %v439 = vpop.permute.xlu0 %438
      %440 = vrot.lane.b32.xlu0 %v338, 81
      %v441 = vpop.permute.xlu0 %440
      %442 = vrot.lane.b32.xlu0 %v349, 81
      %v443 = vpop.permute.xlu0 %442
      %444 = vrot.lane.b32.xlu0 %v355, 81
      %v445 = vpop.permute.xlu0 %444
      %446 = vrot.lane.b32.xlu0 %v356, 81
      %v447 = vpop.permute.xlu0 %446
      %448 = vrot.lane.b32.xlu0 %v361, 81
      %v449 = vpop.permute.xlu0 %448
      %450 = vrot.lane.b32.xlu0 %v367, 81
      %v451 = vpop.permute.xlu0 %450
      %452 = vrot.lane.b32.xlu0 %v368, 81
      %v453 = vpop.permute.xlu0 %452
      %454 = vrot.lane.b32.xlu0 %v373, 81
      %v455 = vpop.permute.xlu0 %454
      %456 = vrot.lane.b32.xlu0 %v379, 81
      %v457 = vpop.permute.xlu0 %456
      %458 = vrot.lane.b32.xlu0 %v380, 81
      %v459 = vpop.permute.xlu0 %458
      %460 = vrot.lane.b32.xlu0 %v383, 81
      %v461 = vpop.permute.xlu0 %460
      %462 = vrot.lane.b32.xlu0 %v389, 81
      %v463 = vpop.permute.xlu0 %462
      %464 = vrot.lane.b32.xlu0 %v390, 81
      %v465 = vpop.permute.xlu0 %464
      %466 = vrot.lane.b32.xlu0 %v392, 81
      %v467 = vpop.permute.xlu0 %466
      %468 = vrot.lane.b32.xlu0 %v398, 81
      %v469 = vpop.permute.xlu0 %468
      %470 = vrot.lane.b32.xlu0 %v399, 81
      %v471 = vpop.permute.xlu0 %470
      %472 = vrot.lane.b32.xlu0 %v401, 81
      %v473 = vpop.permute.xlu0 %472
      %474 = vrot.lane.b32.xlu0 %v407, 81
      %v475 = vpop.permute.xlu0 %474
      %476 = vrot.lane.b32.xlu0 %v408, 81
      %v477 = vpop.permute.xlu0 %476
      %478 = vrot.lane.b32.xlu0 %v410, 81
      %v479 = vpop.permute.xlu0 %478
      %480 = vrot.lane.b32.xlu0 %v416, 81
      %v481 = vpop.permute.xlu0 %480
      %482 = vrot.lane.b32.xlu0 %v417, 81
      %v483 = vpop.permute.xlu0 %482
      %484 = vrot.lane.b32.xlu0 %v419, 81
      %v485 = vpop.permute.xlu0 %484
      %486 = vrot.lane.b32.xlu0 %v425, 81
      %v487 = vpop.permute.xlu0 %486
      %488 = vrot.lane.b32.xlu0 %v426, 81
      %v489 = vpop.permute.xlu0 %488
      %vm490 = vcmask 662528
      %v491 = vsel %vm490, %v437, %v439
      %v492 = vsel %vm490, %v439, %v441
      %v493 = vsel %vm490, %v443, %v445
      %v494 = vsel %vm490, %v445, %v447
      %v495 = vsel %vm490, %v449, %v451
      %v496 = vsel %vm490, %v451, %v453
      %v497 = vsel %vm490, %v455, %v457
      %v498 = vsel %vm490, %v457, %v459
      %v499 = vsel %vm490, %v461, %v463
      %v500 = vsel %vm490, %v463, %v465
      %v501 = vsel %vm490, %v467, %v469
      %v502 = vsel %vm490, %v469, %v471
      %v503 = vsel %vm490, %v473, %v475
      %v504 = vsel %vm490, %v475, %v477
      %v505 = vsel %vm490, %v479, %v481
      %v506 = vsel %vm490, %v481, %v483
      %v507 = vsel %vm490, %v485, %v487
      %v508 = vsel %vm490, %v487, %v489
      %vm536 = vcmask 588800
      %v538 = vsel %vm536, %v427, 0
      %540 = vmatpush.msra.mxu0 0.0
      %541 = vmatpush.msra.mxu0 0.0
      %542 = vmatpush.msra.mxu0 0.0
      %543 = vmatpush.msra.mxu0 0.0
      %544 = vmatpush.msra.mxu0 0.0
      %545 = vmatpush.msra.mxu0 0.0
      %546 = vmatpush.msra.mxu0 0.0
      %547 = vmatpush.msra.mxu0 %v507
      %548 = vmatpush.msra.mxu0 %v505
      %549 = vmatpush.msra.mxu0 %v503
      %550 = vmatpush.msra.mxu0 %v501
      %551 = vmatpush.msra.mxu0 %v499
      %552 = vmatpush.msra.mxu0 %v497
      %553 = vmatpush.msra.mxu0 %v495
      %554 = vmatpush.msra.mxu0 %v493
      %555 = vmatpush.msra.mxu0 %v491
      %556 = vmatmul.f32.gmra.mxu0 %v538
      %v557 = vpop.f32.mrf.mxu0
      %v558 = vadd.f32 %v432, %v557
      %559 = vdwg.mxu0
      %560 = vmatpush.msra.mxu0 0.0
      %561 = vmatpush.msra.mxu0 0.0
      %562 = vmatpush.msra.mxu0 0.0
      %563 = vmatpush.msra.mxu0 0.0
      %564 = vmatpush.msra.mxu0 0.0
      %565 = vmatpush.msra.mxu0 0.0
      %566 = vmatpush.msra.mxu0 0.0
      %567 = vmatpush.msra.mxu0 %v508
      %568 = vmatpush.msra.mxu0 %v506
      %569 = vmatpush.msra.mxu0 %v504
      %570 = vmatpush.msra.mxu0 %v502
      %571 = vmatpush.msra.mxu0 %v500
      %572 = vmatpush.msra.mxu0 %v498
      %573 = vmatpush.msra.mxu0 %v496
      %574 = vmatpush.msra.mxu0 %v494
      %575 = vmatpush.msra.mxu0 %v492
      %576 = vmatmul.f32.gmra.mxu0 %v538
      %v577 = vpop.f32.mrf.mxu0
      %v578 = vadd.f32 %v432, %v577
      %579 = vdwg.mxu0
      %580 = vmatpush.msra.mxu0 0.0
      %581 = vmatpush.msra.mxu0 0.0
      %582 = vmatpush.msra.mxu0 0.0
      %583 = vmatpush.msra.mxu0 0.0
      %584 = vmatpush.msra.mxu0 0.0
      %585 = vmatpush.msra.mxu0 0.0
      %586 = vmatpush.msra.mxu0 0.0
      %587 = vmatpush.msra.mxu0 %v489
      %588 = vmatpush.msra.mxu0 %v483
      %589 = vmatpush.msra.mxu0 %v477
      %590 = vmatpush.msra.mxu0 %v471
      %591 = vmatpush.msra.mxu0 %v465
      %592 = vmatpush.msra.mxu0 %v459
      %593 = vmatpush.msra.mxu0 %v453
      %594 = vmatpush.msra.mxu0 %v447
      %595 = vmatpush.msra.mxu0 %v441
      %596 = vmatmul.f32.gmra.mxu0 %v538
      %v597 = vpop.f32.mrf.mxu0
      %v598 = vadd.f32 %v432, %v597
      %599 = vdwg.mxu0
      %v600 = vmax.f32 %v558, 0.0
      %v601 = vmax.f32 %v578, 0.0
      %v602 = vmax.f32 %v598, 0.0
      %vm603 = vcmp.lt.s32.totalorder %v266, 256
      %vm604 = vcmp.lt.s32.totalorder %v267, 256
      %vm605 = vcmp.lt.s32.totalorder %v268, 256
      %p606 = scmp.ne.s32.totalorder %s21, 0
      %s607 = scalar_select %p606, 1, 0
      %v608 = vstv %s607
      %vm609 = vcmp.eq.s32.totalorder %v608, 1
      %vm610 = vmor %vm603, %vm609
      %vm611 = vmor %vm604, %vm609
      %vm612 = vmor %vm605, %vm609
      %v613 = vsel %vm610, 1, 0
      %v614 = vsel %vm611, 1, 0
      %v615 = vsel %vm612, 1, 0
      %vm616 = vcmp.eq.s32.totalorder %v613, 1
      %vm617 = vcmp.eq.s32.totalorder %v614, 1
      %vm618 = vcmp.eq.s32.totalorder %v615, 1
      %v619 = vsel %vm616, %v600, 0.0
      %v620 = vsel %vm617, %v601, 0.0
      %v621 = vsel %vm618, %v602, 0.0
      %v622 = vsel %vm323, 0.0, %v619
      %v623 = vsel %vm324, 0.0, %v620
      %v624 = vsel %vm325, 0.0, %v621
      %vm625 = vcmask 1047680
      %626 = vrot.lane.b32.xlu0 %v622, 16
      %v627 = vpop.permute.xlu0 %626
      %v628 = vsel %vm625, %v627, %v624
      %629 = vrot.lane.b32.xlu0 %v619, 16
      %v630 = vpop.permute.xlu0 %629
      %v631 = vsel %vm625, %v630, %v621
      %635 = vrot.lane.b32.xlu0 %v622, 127
      %v636 = vpop.permute.xlu0 %635
      %637 = vrot.lane.b32.xlu0 %v623, 127
      %v638 = vpop.permute.xlu0 %637
      %639 = vrot.lane.b32.xlu0 %v628, 127
      %v640 = vpop.permute.xlu0 %639
      %vm641 = vcmask 1039360
      %v642 = vsel %vm641, %v636, %v638
      %v643 = vsel %vm641, %v638, %v640
      %649 = vrot.lane.b32.xlu0 %v619, 112
      %v650 = vpop.permute.xlu0 %649
      %651 = vrot.lane.b32.xlu0 %v620, 112
      %v652 = vpop.permute.xlu0 %651
      %653 = vrot.lane.b32.xlu0 %v631, 112
      %v654 = vpop.permute.xlu0 %653
      %vm655 = vcmask 916480
      %v656 = vsel %vm655, %v650, %v652
      %v657 = vsel %vm655, %v652, %v654
      %660 = vrot.lane.b32.xlu0 %v622, 111
      %v661 = vpop.permute.xlu0 %660
      %662 = vrot.lane.b32.xlu0 %v623, 111
      %v663 = vpop.permute.xlu0 %662
      %664 = vrot.lane.b32.xlu0 %v628, 111
      %v665 = vpop.permute.xlu0 %664
      %vm666 = vcmask 908288
      %v667 = vsel %vm666, %v661, %v663
      %v668 = vsel %vm666, %v663, %v665
      %v671 = vld [vmem:[%s3] sm:$0xff]
      %v672 = vld [vmem:[%s3 + $0x8] sm:$0xff]
      %v673 = vld [vmem:[%s4] sm:$0xff]
      %v674 = vld [vmem:[%s4 + $0x8] sm:$0xff]
      %676 = vset.pattern.permute.xlu0 0
      %677 = vperm.xlu0 %676, %v673
      %v678 = vpop.permute.xlu0 %677
      %681 = vset.pattern.permute.xlu0 0
      %682 = vperm.xlu0 %681, %v674
      %v683 = vpop.permute.xlu0 %682
      %v686 = vsel %vm378, %v671, 0
      %v689 = vsel %vm378, %v672, 0
      %691 = vmatpush.msra.mxu0 0.0
      %692 = vmatpush.msra.mxu0 0.0
      %693 = vmatpush.msra.mxu0 0.0
      %694 = vmatpush.msra.mxu0 0.0
      %695 = vmatpush.msra.mxu0 0.0
      %696 = vmatpush.msra.mxu0 0.0
      %697 = vmatpush.msra.mxu0 0.0
      %698 = vmatpush.msra.mxu0 0.0
      %699 = vmatpush.msra.mxu0 0.0
      %700 = vmatpush.msra.mxu0 0.0
      %701 = vmatpush.msra.mxu0 0.0
      %702 = vmatpush.msra.mxu0 0.0
      %703 = vmatpush.msra.mxu0 %v667
      %704 = vmatpush.msra.mxu0 %v656
      %705 = vmatpush.msra.mxu0 %v642
      %706 = vmatpush.msra.mxu0 %v619
      %707 = vmatmul.f32.gmra.mxu0 %v686
      %v708 = vpop.f32.mrf.mxu0
      %v709 = vadd.f32 %v678, %v708
      %710 = vmatmul.f32.gmra.mxu0 %v689
      %v711 = vpop.f32.mrf.mxu0
      %v712 = vadd.f32 %v683, %v711
      %713 = vdwg.mxu0
      %714 = vmatpush.msra.mxu0 0.0
      %715 = vmatpush.msra.mxu0 0.0
      %716 = vmatpush.msra.mxu0 0.0
      %717 = vmatpush.msra.mxu0 0.0
      %718 = vmatpush.msra.mxu0 0.0
      %719 = vmatpush.msra.mxu0 0.0
      %720 = vmatpush.msra.mxu0 0.0
      %721 = vmatpush.msra.mxu0 0.0
      %722 = vmatpush.msra.mxu0 0.0
      %723 = vmatpush.msra.mxu0 0.0
      %724 = vmatpush.msra.mxu0 0.0
      %725 = vmatpush.msra.mxu0 0.0
      %726 = vmatpush.msra.mxu0 %v668
      %727 = vmatpush.msra.mxu0 %v657
      %728 = vmatpush.msra.mxu0 %v643
      %729 = vmatpush.msra.mxu0 %v620
      %730 = vmatmul.f32.gmra.mxu0 %v686
      %v731 = vpop.f32.mrf.mxu0
      %v732 = vadd.f32 %v678, %v731
      %733 = vmatmul.f32.gmra.mxu0 %v689
      %v734 = vpop.f32.mrf.mxu0
      %v735 = vadd.f32 %v683, %v734
      %736 = vdwg.mxu0
      %v737 = vmax.f32 %v709, 0.0
      %v738 = vmax.f32 %v732, 0.0
      %v739 = vmax.f32 %v712, 0.0
      %v740 = vmax.f32 %v735, 0.0
      %741 = vst [vmem:[%s260] sm:$0xff] %v737
      %742 = vst [vmem:[%s260 + $0x8] sm:$0xff] %v738
      %743 = vst [vmem:[%s260 + $0x10] sm:$0xff] %v739
      %744 = vst [vmem:[%s260 + $0x18] sm:$0xff] %v740
      %s745 = smul.u32 2, %s21
      %p746 = scmp.lt.s32.totalorder %s20, 1
      %s747 = scalar_select %p746, %s20, 1
      %p748 = scmp.lt.s32.totalorder %s745, 1
      %s749 = scalar_select %p748, %s745, 1
      %s750 = smul.addr %s747, 4
      %s751 = sadd.s32 %s749, %s750
      %s752 = smul.addr %s751, 8
      %s753 = scalar_lea.vmem %s5, %s752
      // Predicated region
      $region41: #{decoder_block_forward.1} parent=39 // pred_check
        %p754 = pneg %p160
      $region42: #{decoder_block_forward.1} parent=39 // pred_check_branch
        %756 = sbr.rel (%p754) target = $region44
      $region43: #{decoder_block_forward.1} parent=39 // pred_region
        %s757 = smul.u32 2, %s21
      $region44: #{decoder_block_forward.1} parent=39 // pred_fallthru
        _
    $region40: #{decoder_block_forward.1} parent=5 // pred_fallthru
      _
    %p758 = scmp.le.s32.totalorder 2, %s11
    // Predicated region
    $region45: #{decoder_block_forward.1} parent=5 // pred_check
      %p759 = pneg %p758
    $region46: #{decoder_block_forward.1} parent=5 // pred_check_branch
      %761 = sbr.rel (%p759) target = $region48
    $region47: #{decoder_block_forward.1} parent=5 // pred_region
      %s762 = ssub.s32 %s11, 2
      // Predicated region
      $region49: #{decoder_block_forward.1} parent=47 // pred_check
        %p763 = pneg %p166
      $region50: #{decoder_block_forward.1} parent=47 // pred_check_branch
        %765 = sbr.rel (%p763) target = $region52
      $region51: #{decoder_block_forward.1} parent=47 // pred_region
        %s766 = smul.u32 2, %s23
        %p767 = scmp.lt.s32.totalorder %s22, 1
        %s768 = scalar_select %p767, %s22, 1
        %p769 = scmp.lt.s32.totalorder %s766, 1
        %s770 = scalar_select %p769, %s766, 1
        %s771 = smul.addr %s768, 4
        %s772 = sadd.s32 %s770, %s771
        %s773 = smul.addr %s772, 8
        %s774 = scalar_lea.vmem %s5, %s773
      $region52: #{decoder_block_forward.1} parent=47 // pred_fallthru
        _
    $region48: #{decoder_block_forward.1} parent=5 // pred_fallthru
      _
  $region6: #{decoder_block_forward.1} parent=0 // loop_footer
    %s15 = sadd.s32 1, %s11
  $region7: #{decoder_block_forward.1} parent=0 // loop_footer_branch
    %10 = sbr.rel target = $region3
  $region8: #{decoder_block_forward.1} parent=0 // loop_exit
    _

</llo_original>
